<compile_context>
chip_gen: v7x
topology: tpu7x:2x2x1
jax: 0.10.0
libtpu: 0.0.40
codegen_flags: <defaults>
</compile_context>

<pallas_src>
import jax
import jax.numpy as jnp
from jax.experimental import pallas as pl
from jax.experimental.pallas import tpu as pltpu

_LANES = 128
_BF16_SUBLANES = 16  # bf16 packs 16 sublanes per vreg tile


def _round_up(x, m):
    return (x + m - 1) // m * m


def _infarct_kernel(slab_ref, out_ref, acc_ref):
    s = pl.program_id(1)

    @pl.when(s == 0)
    def _():
        acc_ref[...] = jnp.zeros_like(acc_ref)

    # (TB, 2, SR, 128) bf16 -> f32; reduce only the sublane (spatial-row) axis so
    # the hot loop keeps per-lane partials and avoids cross-lane (XLU) reduces.
    x = slab_ref[...].astype(jnp.float32)
    acc_ref[...] += jnp.sum(x, axis=2)

    @pl.when(s == pl.num_programs(1) - 1)
    def _():
        acc = acc_ref[...]                                     # (TB, 2, 128) f32
        area = jnp.sum(acc[:, 0, :], axis=-1, keepdims=True)   # (TB, 1) infarct px
        lv = jnp.sum(acc[:, 1, :], axis=-1, keepdims=True)     # (TB, 1) LV myo px
        denom = area + lv
        # _safe_divide: 0 when the denominator is 0.
        ratio = jnp.where(denom == 0.0, 0.0, area / denom)     # (TB, 1)
        # Lane-dense packed output: lane 0 = area, lane 1 = ratio, rest 0.
        lane = jax.lax.broadcasted_iota(jnp.int32, out_ref.shape, 1)  # (TB, 128)
        out_ref[...] = jnp.where(lane == 0, area, jnp.where(lane == 1, ratio, 0.0))


def infarct_heuristics(segmentation_mask, lv_index=1, infarct_index=2):
    """Pallas implementation of InfarctHeuristics.forward.

    Args:
        segmentation_mask: one-hot mask of shape (B, C, H, W) (or (C, H, W)).
        lv_index: channel index of the LV myocardium.
        infarct_index: channel index of the infarct.

    Returns:
        dict with infarct_area (B,), ratio (B,), span (B,), transmurality (B,).
    """
    if segmentation_mask.ndim == 3:
        segmentation_mask = segmentation_mask[None]
    B, C, H, W = segmentation_mask.shape
    n = H * W

    # Static channel selection, fused into one slab: channel 0 = infarct, 1 = LV.
    slab = jnp.stack(
        [segmentation_mask[:, infarct_index], segmentation_mask[:, lv_index]],
        axis=1,
    ).reshape(B, 2, n)

    # Batch blocking: up to 8 batch elements per grid step.
    tb = min(B, 8)
    b_pad = _round_up(B, tb)

    # Lane-dense spatial layout, padded to bf16 (16, 128) tiles.
    r = _round_up(pl.cdiv(n, _LANES), _BF16_SUBLANES)

    # Spatial reduction tile: cap per-step slab bytes (bf16) at ~4 MiB so the
    # double-buffered working set fits scoped VMEM on every generation.
    max_step_bytes = 4 * 1024 * 1024
    bytes_per_row = 2 * _LANES * 2  # 2 channels * 128 lanes * bf16
    sr = max(
        _BF16_SUBLANES,
        (max_step_bytes // (tb * bytes_per_row)) // _BF16_SUBLANES * _BF16_SUBLANES,
    )
    sr = min(sr, r)
    r = _round_up(r, sr)
    n_pad = r * _LANES

    slab = jnp.pad(slab, ((0, b_pad - B), (0, 0), (0, n_pad - n)))
    slab = slab.reshape(b_pad, 2, r, _LANES).astype(jnp.bfloat16)

    grid = (b_pad // tb, r // sr)

    step_in_bytes = tb * 2 * sr * _LANES * 2          # bf16 input block
    out_block_bytes = tb * _LANES * 4
    scratch_bytes = tb * 2 * _LANES * 4
    vmem_limit = min(
        max(2 * step_in_bytes + 2 * out_block_bytes + scratch_bytes + (2 << 20),
            16 << 20),
        64 << 20,
    )

    out = pl.pallas_call(
        _infarct_kernel,
        grid=grid,
        in_specs=[pl.BlockSpec((tb, 2, sr, _LANES), lambda b, s: (b, 0, s, 0))],
        out_specs=pl.BlockSpec((tb, _LANES), lambda b, s: (b, 0)),
        out_shape=jax.ShapeDtypeStruct((b_pad, _LANES), jnp.float32),
        scratch_shapes=[pltpu.VMEM((tb, 2, _LANES), jnp.float32)],
        compiler_params=pltpu.CompilerParams(
            dimension_semantics=("parallel", "arbitrary"),
            vmem_limit_bytes=vmem_limit,
        ),
    )(slab)

    areas = out[:B, 0]
    ratios = out[:B, 1]

    # TODO(synk): spans / transmuralities require cv2 polar warping and
    # connected-component analysis — no clean Pallas equivalent; return zeros.
    spans = jnp.zeros((B,), dtype=jnp.float32)
    transmuralities = jnp.zeros((B,), dtype=jnp.float32)

    return {
        "infarct_area": areas,
        "ratio": ratios,
        "span": spans,
        "transmurality": transmuralities,
    }


if __name__ == "__main__":
    key = jax.random.PRNGKey(0)
    B, C, H, W = 2, 4, 16, 16

    # Deterministic one-hot segmentation mask (B, C, H, W).
    labels = jax.random.randint(key, (B, H, W), minval=0, maxval=C)
    seg_mask = jax.nn.one_hot(labels, C, axis=1).astype(jnp.float32)

    out = infarct_heuristics(seg_mask, lv_index=1, infarct_index=2)
    out = jax.tree_util.tree_map(jax.block_until_ready, out)

    # Cross-check the in-kernel reductions against plain JAX.
    ref_area = seg_mask[:, 2].sum(axis=(1, 2))
    ref_denom = ref_area + seg_mask[:, 1].sum(axis=(1, 2))
    ref_ratio = jnp.where(ref_denom == 0.0, 0.0, ref_area / ref_denom)
    assert jnp.allclose(out["infarct_area"], ref_area), (out["infarct_area"], ref_area)
    assert jnp.allclose(out["ratio"], ref_ratio), (out["ratio"], ref_ratio)

    print("KERNEL_OK")
</pallas_src>

<mosaic_0001>
module attributes {stable_mosaic.version = 11 : i64} {
  func.func @_infarct_kernel(%arg0: i32, %arg1: i32, %arg2: memref<2x2x16x128xbf16, #tpu.memory_space<vmem>>, %arg3: memref<2x128xf32, #tpu.memory_space<vmem>>, %arg4: memref<2x2x128xf32, #tpu.memory_space<vmem>>) attributes {dimension_semantics = [#tpu.dimension_semantics<parallel>, #tpu.dimension_semantics<arbitrary>], iteration_bounds = array<i64: 1, 1>, scalar_prefetch = 0 : i64, scratch_operands = 1 : i64, tpu.core_type = #tpu.core_type<tc>, window_params = [{transform_indices = @transform_0, window_bounds = array<i64: 2, 2, 16, 128>}, {transform_indices = @transform_1, window_bounds = array<i64: 2, 128>}]} {
    %c0_i32 = arith.constant 0 : i32
    %0 = arith.cmpi eq, %arg1, %c0_i32 : i32
    %1 = arith.extui %0 : i1 to i32
    %c0_i32_0 = arith.constant 0 : i32
    %2 = arith.cmpi ne, %1, %c0_i32_0 : i32
    scf.if %2 {
      %cst_12 = arith.constant 0.000000e+00 : f32
      %12 = vector.broadcast %cst_12 : f32 to vector<2x2x128xf32>
      %c0_13 = arith.constant 0 : index
      %c0_14 = arith.constant 0 : index
      %c0_15 = arith.constant 0 : index
      %13 = vector.load %arg4[%c0_13, %c0_14, %c0_15] : memref<2x2x128xf32, #tpu.memory_space<vmem>>, vector<2x2x128xf32>
      tpu.vector_store %arg4[%c0_13, %c0_14, %c0_15], %12 {strides = array<i32>} : memref<2x2x128xf32, #tpu.memory_space<vmem>>, vector<2x2x128xf32>,
    } else {
    }
    %c0 = arith.constant 0 : index
    %c0_1 = arith.constant 0 : index
    %c0_2 = arith.constant 0 : index
    %c0_3 = arith.constant 0 : index
    %3 = vector.load %arg2[%c0, %c0_1, %c0_2, %c0_3] : memref<2x2x16x128xbf16, #tpu.memory_space<vmem>>, vector<2x2x16x128xbf16>
    %4 = arith.extf %3 : vector<2x2x16x128xbf16> to vector<2x2x16x128xf32>
    %c0_4 = arith.constant 0 : index
    %c0_5 = arith.constant 0 : index
    %c0_6 = arith.constant 0 : index
    %5 = vector.load %arg4[%c0_4, %c0_5, %c0_6] : memref<2x2x128xf32, #tpu.memory_space<vmem>>, vector<2x2x128xf32>
    %cst = arith.constant dense<0.000000e+00> : vector<2x2x128xf32>
    %6 = vector.multi_reduction <add>, %4, %cst [2] : vector<2x2x16x128xf32> to vector<2x2x128xf32>
    %7 = arith.addf %5, %6 : vector<2x2x128xf32>
    %c0_7 = arith.constant 0 : index
    %c0_8 = arith.constant 0 : index
    %c0_9 = arith.constant 0 : index
    %8 = vector.load %arg4[%c0_7, %c0_8, %c0_9] : memref<2x2x128xf32, #tpu.memory_space<vmem>>, vector<2x2x128xf32>
    tpu.vector_store %arg4[%c0_7, %c0_8, %c0_9], %7 {strides = array<i32>} : memref<2x2x128xf32, #tpu.memory_space<vmem>>, vector<2x2x128xf32>,
    %c0_i32_10 = arith.constant 0 : i32
    %9 = arith.cmpi eq, %arg1, %c0_i32_10 : i32
    %10 = arith.extui %9 : i1 to i32
    %c0_i32_11 = arith.constant 0 : i32
    %11 = arith.cmpi ne, %10, %c0_i32_11 : i32
    scf.if %11 {
      %c0_12 = arith.constant 0 : index
      %c0_13 = arith.constant 0 : index
      %c0_14 = arith.constant 0 : index
      %12 = vector.load %arg4[%c0_12, %c0_13, %c0_14] : memref<2x2x128xf32, #tpu.memory_space<vmem>>, vector<2x2x128xf32>
      %13 = vector.extract_strided_slice %12 {offsets = [0, 0, 0], sizes = [2, 1, 128], strides = [1, 1, 1]} : vector<2x2x128xf32> to vector<2x1x128xf32>
      %14 = vector.shape_cast %13 : vector<2x1x128xf32> to vector<2x128xf32>
      %cst_15 = arith.constant dense<0.000000e+00> : vector<2xf32>
      %15 = vector.multi_reduction <add>, %14, %cst_15 [1] : vector<2x128xf32> to vector<2xf32>
      %16 = vector.shape_cast %15 : vector<2xf32> to vector<2x1xf32>
      %17 = vector.extract_strided_slice %12 {offsets = [0, 1, 0], sizes = [2, 1, 128], strides = [1, 1, 1]} : vector<2x2x128xf32> to vector<2x1x128xf32>
      %18 = vector.shape_cast %17 : vector<2x1x128xf32> to vector<2x128xf32>
      %cst_16 = arith.constant dense<0.000000e+00> : vector<2xf32>
      %19 = vector.multi_reduction <add>, %18, %cst_16 [1] : vector<2x128xf32> to vector<2xf32>
      %20 = vector.shape_cast %19 : vector<2xf32> to vector<2x1xf32>
      %21 = arith.addf %16, %20 : vector<2x1xf32>
      %cst_17 = arith.constant 0.000000e+00 : f32
      %22 = vector.broadcast %cst_17 : f32 to vector<2x1xf32>
      %23 = arith.cmpf oeq, %21, %22 : vector<2x1xf32>
      %24 = arith.divf %16, %21 : vector<2x1xf32>
      %cst_18 = arith.constant 0.000000e+00 : f32
      %25 = vector.broadcast %cst_18 : f32 to vector<2x1xf32>
      %26 = arith.select %23, %25, %24 : vector<2x1xi1>, vector<2x1xf32>
      %27 = tpu.iota {dimensions = array<i32: 1>} : vector<2x128xi32>
      %c0_i32_19 = arith.constant 0 : i32
      %28 = vector.broadcast %c0_i32_19 : i32 to vector<2x128xi32>
      %29 = arith.cmpi eq, %27, %28 : vector<2x128xi32>
      %c1_i32 = arith.constant 1 : i32
      %30 = vector.broadcast %c1_i32 : i32 to vector<2x128xi32>
      %31 = arith.cmpi eq, %27, %30 : vector<2x128xi32>
      %cst_20 = arith.constant 0.000000e+00 : f32
      %32 = vector.shape_cast %26 : vector<2x1xf32> to vector<2x1xf32>
      %33 = vector.broadcast %32 : vector<2x1xf32> to vector<2x128xf32>
      %34 = vector.broadcast %cst_20 : f32 to vector<2x128xf32>
      %35 = arith.select %31, %33, %34 : vector<2x128xi1>, vector<2x128xf32>
      %36 = vector.shape_cast %16 : vector<2x1xf32> to vector<2x1xf32>
      %37 = vector.broadcast %36 : vector<2x1xf32> to vector<2x128xf32>
      %38 = arith.select %29, %37, %35 : vector<2x128xi1>, vector<2x128xf32>
      %c0_21 = arith.constant 0 : index
      %c0_22 = arith.constant 0 : index
      %39 = vector.load %arg3[%c0_21, %c0_22] : memref<2x128xf32, #tpu.memory_space<vmem>>, vector<2x128xf32>
      tpu.vector_store %arg3[%c0_21, %c0_22], %38 {strides = array<i32>} : memref<2x128xf32, #tpu.memory_space<vmem>>, vector<2x128xf32>,
    } else {
    }
    return
  }
  func.func @transform_0(%arg0: i32, %arg1: i32) -> (i32, i32, i32, i32) {
    %c0_i32 = arith.constant 0 : i32
    %c0_i32_0 = arith.constant 0 : i32
    %c0_i32_1 = arith.constant 0 : i32
    return %arg0, %c0_i32, %arg1, %c0_i32_0 : i32, i32, i32, i32
  }
  func.func @transform_1(%arg0: i32, %arg1: i32) -> (i32, i32) {
    %c0_i32 = arith.constant 0 : i32
    %c0_i32_0 = arith.constant 0 : i32
    return %arg0, %c0_i32 : i32, i32
  }
}

</mosaic_0001>

<llo_original>
// kernel: tpu_custom_call.1
$region0: #{tpu_custom_call.1}
  #allocation0 [shape = 'u32[]', space=smem, size = 0x4, offset = 0x4, fixed_abs, tag = 'smem constant byte address 0x4 - core index']
  #allocation1 [shape = 'u32[144,128]{1,0:T(1,128)}', space=vmem, size = 0x12000, scoped, tag = 'internal scratch']
  #allocation2 [shape = 'f32[2,2,128]{2,1,0:T(2,128)}', space=vmem, size = 0x800, scoped, tag = 'scratch operand']
  %s0 = inlined_call_operand.hbm [shape: bf16[2,2,16,128], index: 0, kind: input, shape index: {}]
  %s1 = inlined_call_operand.hbm [shape: f32[2,128], index: 1, kind: output, shape index: {}]
  %s2 = sld [smem:[#allocation0]]
  $region26: #{tpu_custom_call.1} parent=0
    _
  %s4 = ssub.s32 1, %s2
  %s5 = scalar_select 0, %s4, %s2
  $region1: #{tpu_custom_call.1} parent=0
    #allocation3 [shape = 'u8[16384]{0}', space=vmem, size = 0x4000, scoped, tag = 'input window, operand 0, single buffered']
    #allocation4 [shape = 's32[1]{0}', space=sflag, size = 0x4, scoped, tag = 'scoped memory for tpu_custom_call.1']
    #allocation5 [shape = 's32[1]{0}', space=sflag, size = 0x4, scoped, tag = 'scoped memory for tpu_custom_call.1']
    #allocation6 [shape = 'u8[1024]{0}', space=vmem, size = 0x400, scoped, tag = 'output window, operand 0, single buffered']
    %6 = vsyncpa [#allocation4], 0
    %7 = vsyncpa [#allocation5], 0
    // Predicated region
    $region2: #{tpu_custom_call.1} parent=1 // pred_check
      _
    $region3: #{tpu_custom_call.1} parent=1 // pred_check_branch
      %9 = sbr.rel (0) target = $region5
    $region4: #{tpu_custom_call.1} parent=1 // pred_region
      %s11 = ssub.s32 512, 512
      %12 = vsyncadd [#allocation4], %s11
      %s13 = sshll.u32 [#allocation3], 4
      %s14 = int_to_ptr.vmem [resolvable:$true] %s13
      %19 = dma.hbm_to_vmem [thread:$0]  %s0, 512, %s14, [#allocation4], 64, 64, 4
    $region5: #{tpu_custom_call.1} parent=1 // pred_fallthru
      _
    // Predicated region
    $region6: #{tpu_custom_call.1} parent=1 // pred_check
      _
    $region7: #{tpu_custom_call.1} parent=1 // pred_check_branch
      %21 = sbr.rel (0) target = $region9
    $region8: #{tpu_custom_call.1} parent=1 // pred_region
      %22 = dma.done [#allocation4], 512
    $region9: #{tpu_custom_call.1} parent=1 // pred_fallthru
      _
    %p23 = scmp.eq.s32.totalorder 0, 0
    // Predicated region
    $region10: #{tpu_custom_call.1} parent=1 // pred_check
      %p24 = pneg %p23
    $region11: #{tpu_custom_call.1} parent=1 // pred_check_branch
      %26 = sbr.rel (%p24) target = $region13
    $region12: #{tpu_custom_call.1} parent=1 // pred_region
      %27 = vst [vmem:[#allocation2] sm:$0x3] 0.0
      %28 = vst [vmem:[#allocation2 + $0x2] sm:$0x3] 0.0
    $region13: #{tpu_custom_call.1} parent=1 // pred_fallthru
      _
    %v29 = vld [vmem:[#allocation3] sm:$0xf]
    %v30 = vld [vmem:[#allocation3 + $0x4] sm:$0xf]
    %v31 = vld [vmem:[#allocation3 + $0x8] sm:$0xf]
    %v32 = vld [vmem:[#allocation3 + $0xc] sm:$0xf]
    %v33 = vld [vmem:[#allocation3 + $0x10] sm:$0xf]
    %v34 = vld [vmem:[#allocation3 + $0x14] sm:$0xf]
    %v35 = vld [vmem:[#allocation3 + $0x18] sm:$0xf]
    %v36 = vld [vmem:[#allocation3 + $0x1c] sm:$0xf]
    %v37 = vunpack.c.l.bf16 %v29
    %v38 = vunpack.c.l.bf16 %v30
    %v39 = vunpack.c.l.bf16 %v31
    %v40 = vunpack.c.l.bf16 %v32
    %v41 = vunpack.c.l.bf16 %v33
    %v42 = vunpack.c.l.bf16 %v34
    %v43 = vunpack.c.l.bf16 %v35
    %v44 = vunpack.c.l.bf16 %v36
    %v45 = vld [vmem:[#allocation2] sm:$0x3]
    %v46 = vld [vmem:[#allocation2 + $0x2] sm:$0x3]
    %v47 = vadd.f32 %v37, %v38
    %v48 = vrot.slane %v47, 4
    %v49 = vadd.f32 %v47, %v48
    %v50 = vrot.slane %v49, 2
    %v51 = vadd.f32 %v49, %v50
    %v52 = vrot.slane %v51, 1
    %v53 = vadd.f32 %v51, %v52
    %v54 = vadd.f32 %v39, %v40
    %v55 = vrot.slane %v54, 4
    %v56 = vadd.f32 %v54, %v55
    %v57 = vrot.slane %v56, 2
    %v58 = vadd.f32 %v56, %v57
    %v59 = vrot.slane %v58, 1
    %v60 = vadd.f32 %v58, %v59
    %v61 = vadd.f32 %v41, %v42
    %v62 = vrot.slane %v61, 4
    %v63 = vadd.f32 %v61, %v62
    %v64 = vrot.slane %v63, 2
    %v65 = vadd.f32 %v63, %v64
    %v66 = vrot.slane %v65, 1
    %v67 = vadd.f32 %v65, %v66
    %v68 = vadd.f32 %v43, %v44
    %v69 = vrot.slane %v68, 4
    %v70 = vadd.f32 %v68, %v69
    %v71 = vrot.slane %v70, 2
    %v72 = vadd.f32 %v70, %v71
    %v73 = vrot.slane %v72, 1
    %v74 = vadd.f32 %v72, %v73
    %vm79 = vcmask 1041409
    %v80 = vsel %vm79, %v60, %v53
    %v81 = vsel %vm79, %v74, %v67
    %v84 = vadd.f32 %v45, %v80
    %v85 = vadd.f32 %v46, %v81
    %86 = vst [vmem:[#allocation2] sm:$0x3] %v84
    %87 = vst [vmem:[#allocation2 + $0x2] sm:$0x3] %v85
    // Predicated region
    $region14: #{tpu_custom_call.1} parent=1 // pred_check
      %p88 = pneg %p23
    $region15: #{tpu_custom_call.1} parent=1 // pred_check_branch
      %90 = sbr.rel (%p88) target = $region17
    $region16: #{tpu_custom_call.1} parent=1 // pred_region
      %v91 = vld [vmem:[#allocation2] sm:$0x3]
      %v92 = vld [vmem:[#allocation2 + $0x2] sm:$0x3]
      %v95 = vrot.slane %v92, 7
      %v96 = vsel %vm79, %v95, %v91
      %vm98 = vcmask 1041408
      %v99 = vsel %vm98, %v96, 0.0
      %100 = vadd.xlane.f32.xlu0 %v99
      %v101 = vpop.xlane.xlu0 %100
      %vm102 = vcmask 1042434
      %v103 = vsel %vm102, %v95, %v91
      %vm105 = vcmask 1042433
      %v106 = vsel %vm105, %v103, 0.0
      %107 = vadd.xlane.f32.xlu0 %v106
      %v108 = vpop.xlane.xlu0 %107
      %v110 = vrot.slane %v108, 1
      %v112 = vadd.f32 %v101, %v110
      %vm113 = vcmp.eq.f32.partialorder %v112, 0.0
      %v114 = vrcp.pop %v112
      %v115 = vmul.f32 %v101, %v114
      %v116 = vsel %vm113, 0.0, %v115
      %v117 = vlaneseq
      %v118 = vand.u32 %v117, 127
      %vm119 = vcmp.eq.s32.totalorder %v118, 0
      %vm120 = vcmp.eq.s32.totalorder %v118, 1
      %122 = vset.pattern.permute.xlu0 0
      %123 = vperm.xlu0 %122, %v116
      %v124 = vpop.permute.xlu0 %123
      %v126 = vsel %vm120, %v124, 0.0
      %v127 = vsel %vm119, %v101, %v126
      %128 = vst [vmem:[#allocation6] sm:$0x3] %v127
    $region17: #{tpu_custom_call.1} parent=1 // pred_fallthru
      _
    // Predicated region
    $region18: #{tpu_custom_call.1} parent=1 // pred_check
      _
    $region19: #{tpu_custom_call.1} parent=1 // pred_check_branch
      %130 = sbr.rel (0) target = $region21
    $region20: #{tpu_custom_call.1} parent=1 // pred_region
      %s132 = ssub.s32 32, 32
      %133 = vsyncadd [#allocation5], %s132
      %s135 = sshll.u32 [#allocation6], 4
      %s136 = int_to_ptr.vmem [resolvable:$true] %s135
      %138 = dma.vmem_to_hbm [thread:$0]  %s136, 32, %s1, [#allocation5]
    $region21: #{tpu_custom_call.1} parent=1 // pred_fallthru
      _
    // Predicated region
    $region22: #{tpu_custom_call.1} parent=1 // pred_check
      _
    $region23: #{tpu_custom_call.1} parent=1 // pred_check_branch
      %140 = sbr.rel (0) target = $region25
    $region24: #{tpu_custom_call.1} parent=1 // pred_region
      %141 = dma.done [#allocation5], 32
    $region25: #{tpu_custom_call.1} parent=1 // pred_fallthru
      _
    %142 = vsyncpa [#allocation4], 1
    %143 = vsyncpa [#allocation5], 1

</llo_original>
